<compile_context>
chip_gen: v5e
topology: v5e:2x2
jax: 0.10.0
libtpu: 0.0.40
codegen_flags: <defaults>
</compile_context>

<pallas_src>
import functools

import jax
import jax.numpy as jnp
from jax.experimental import pallas as pl
from jax.experimental.pallas import tpu as pltpu


def _round_up(x: int, mult: int) -> int:
    return ((x + mult - 1) // mult) * mult


def _apply_raf(y, p):
    """sin_poly2_params activation on a (tm, tn) tile; p is the (8, tn) slab."""
    bias = p[0:1, :]
    a = p[1:2, :]
    b = p[2:3, :]
    c = p[3:4, :]
    d = p[4:5, :]
    y = y + bias                       # (tm, tn) + (1, tn) broadcast
    # jnp.sin lowers to range-reduction + polynomial on the VALU; for large m
    # it is hidden under the MXU.
    return y * a + b * (y * y) + c * jnp.sin(d * y)


def one_layer_kernel_single_k(x_ref, w_ref, p_ref, o_ref):
    """Single contraction step: no accumulator scratch, no init/finalize.

    x_ref: (tm, tk)   activation tile
    w_ref: (tk, tn)   pre-transposed weight tile (W.T, padded)
    p_ref: (8, tn)    packed params: rows = bias, a, b, c, d, 0, 0, 0
    o_ref: (tm, tn)   output tile
    """
    y = jnp.dot(x_ref[...], w_ref[...], preferred_element_type=jnp.float32)
    p = p_ref[...].astype(jnp.float32)
    o_ref[...] = _apply_raf(y, p).astype(o_ref.dtype)


def one_layer_kernel_multi_k(x_ref, w_ref, p_ref, o_ref, acc_ref):
    """Tiled (i, j, k) kernel; k (contraction) is the last grid axis.

    acc_ref: (tm, tn) f32 accumulator scratch, resident across the k axis.
    """
    k = pl.program_id(2)

    @pl.when(k == 0)
    def _init():
        acc_ref[...] = jnp.zeros_like(acc_ref)

    acc_ref[...] += jnp.dot(x_ref[...], w_ref[...],
                            preferred_element_type=jnp.float32)

    @pl.when(k == pl.num_programs(2) - 1)
    def _finalize():
        p = p_ref[...].astype(jnp.float32)
        o_ref[...] = _apply_raf(acc_ref[...], p).astype(o_ref.dtype)


def prepare_one_layer(W, bias, a, b, c, d, *, tn=512, tk=512,
                      weight_dtype=jnp.float32):
    """One-time (init-time) layer preparation.

    Pads + transposes the weight to a lane-dense (m_in_pad, m_out_pad) layout
    and packs bias/a/b/c/d into a single (8, m_out_pad) f32 slab so the
    per-forward path never re-touches the parameters.

    W is stored (out_features, in_features), as in nn.Linear.
    weight_dtype=jnp.bfloat16 stores weights (and feeds activations) in bf16
    for v6e/v7x MXU rate + halved weight HBM bytes; accumulation stays f32.
    """
    m_out, m_in = W.shape
    tn = min(tn, _round_up(m_out, 128))
    tk = min(tk, _round_up(m_in, 128))
    m_out_pad = _round_up(m_out, tn)
    m_in_pad = _round_up(m_in, tk)

    w_t = jnp.zeros((m_in_pad, m_out_pad), weight_dtype)
    w_t = w_t.at[:m_in, :m_out].set(jnp.asarray(W).T.astype(weight_dtype))

    params = jnp.zeros((8, m_out_pad), jnp.float32)
    params = params.at[0, :m_out].set(jnp.asarray(bias).reshape(-1))
    params = params.at[1, :m_out].set(jnp.asarray(a).reshape(-1))
    params = params.at[2, :m_out].set(jnp.asarray(b).reshape(-1))
    params = params.at[3, :m_out].set(jnp.asarray(c).reshape(-1))
    params = params.at[4, :m_out].set(jnp.asarray(d).reshape(-1))

    return {
        "w_t": w_t,            # (m_in_pad, m_out_pad), pre-transposed W
        "params": params,      # (8, m_out_pad)
        "m_in": m_in,
        "m_out": m_out,
        "tn": tn,
        "tk": tk,
    }


def one_layer_forward(x, layer, *, tm=512, out_dtype=jnp.float32):
    """y = raf(x @ W.T + bias) using the prepared layer dict."""
    w_t = layer["w_t"]
    params = layer["params"]
    m_in, m_out = layer["m_in"], layer["m_out"]
    tn, tk = layer["tn"], layer["tk"]
    m_in_pad, m_out_pad = w_t.shape

    N = x.shape[0]
    assert x.shape[1] == m_in

    tm = min(tm, _round_up(N, 8))
    n_pad = _round_up(N, tm)

    x_dtype = w_t.dtype  # match MXU operand dtypes (f32 or bf16)
    if (n_pad != N) or (m_in_pad != m_in) or (x.dtype != x_dtype):
        if (n_pad != N) or (m_in_pad != m_in):
            x_p = jnp.zeros((n_pad, m_in_pad), x_dtype)
            x_p = x_p.at[:N, :m_in].set(x.astype(x_dtype))
        else:
            x_p = x.astype(x_dtype)
    else:
        x_p = x

    n_i = n_pad // tm
    n_j = m_out_pad // tn
    n_k = m_in_pad // tk

    if n_k == 1:
        # Overhead-minimal path: the whole contraction fits in one k step.
        kernel = one_layer_kernel_single_k
        grid = (n_i, n_j)
        in_specs = [
            pl.BlockSpec((tm, tk), lambda i, j: (i, 0)),   # x tile
            pl.BlockSpec((tk, tn), lambda i, j: (0, j)),   # W.T tile
            pl.BlockSpec((8, tn), lambda i, j: (0, j)),    # packed params
        ]
        out_specs = pl.BlockSpec((tm, tn), lambda i, j: (i, j))
        scratch_shapes = []
        dim_sem = ("parallel", "parallel")
    else:
        kernel = one_layer_kernel_multi_k
        grid = (n_i, n_j, n_k)
        in_specs = [
            pl.BlockSpec((tm, tk), lambda i, j, k: (i, k)),   # x tile
            pl.BlockSpec((tk, tn), lambda i, j, k: (k, j)),   # W.T tile
            pl.BlockSpec((8, tn), lambda i, j, k: (0, j)),    # packed params
        ]
        out_specs = pl.BlockSpec((tm, tn), lambda i, j, k: (i, j))
        scratch_shapes = [pltpu.VMEM((tm, tn), jnp.float32)]
        dim_sem = ("parallel", "parallel", "arbitrary")

    out = pl.pallas_call(
        kernel,
        out_shape=jax.ShapeDtypeStruct((n_pad, m_out_pad), out_dtype),
        grid_spec=pltpu.PrefetchScalarGridSpec(
            num_scalar_prefetch=0,
            grid=grid,
            in_specs=in_specs,
            out_specs=out_specs,
            scratch_shapes=scratch_shapes,
        ),
        compiler_params=pltpu.CompilerParams(
            dimension_semantics=dim_sem,
            # Default-tile footprint (<= ~7 MiB f32 at 512^3, double-buffered)
            # fits the default scoped VMEM on v5e/v6e/v7x; raise explicitly.
            vmem_limit_bytes=32 * 1024 * 1024,
        ),
    )(x_p, w_t, params)

    if (n_pad != N) or (m_out_pad != m_out):
        out = out[:N, :m_out]
    return out


# ----------------------------------------------------------------------------
# Reference / test harness
# ----------------------------------------------------------------------------

def init_raw_params(key, m):
    # nn.Linear(m, m): weight/bias ~ U(-1/sqrt(m), 1/sqrt(m))
    kw, kb, ka, kb2, kc, kd = jax.random.split(key, 6)
    bound = 1.0 / jnp.sqrt(jnp.float32(m))
    W = jax.random.uniform(kw, (m, m), jnp.float32, -bound, bound)   # (out, in)
    bias = jax.random.uniform(kb, (1, m), jnp.float32, -bound, bound)
    # sin_poly2_params defaults: a~N(0,.01), b~N(0,.01), c~N(1,.01), d~N(1,.01)
    a = 0.0 + 0.01 * jax.random.normal(ka, (1, m), jnp.float32)
    b = 0.0 + 0.01 * jax.random.normal(kb2, (1, m), jnp.float32)
    c = 1.0 + 0.01 * jax.random.normal(kc, (1, m), jnp.float32)
    d = 1.0 + 0.01 * jax.random.normal(kd, (1, m), jnp.float32)
    return W, bias, a, b, c, d


def reference_forward(x, W, bias, a, b, c, d):
    # NOTE: reference uses Precision.HIGHEST; the kernel's f32 dot uses
    # Mosaic's default f32 path. Current tolerances absorb the difference.
    y = jnp.dot(x, W.T, precision=jax.lax.Precision.HIGHEST) + bias
    return y * a + b * y ** 2 + c * jnp.sin(d * y)


if __name__ == "__main__":
    key = jax.random.PRNGKey(0)

    # --- 1) small shape matching the module (hidden m=32, small batch) ------
    N, m = 8, 32
    kx, kp, krest = jax.random.split(key, 3)
    x = jax.random.normal(kx, (N, m), jnp.float32)
    W, bias, a, b, c, d = init_raw_params(kp, m)

    layer = prepare_one_layer(W, bias, a, b, c, d)          # single-k path
    out = jax.block_until_ready(one_layer_forward(x, layer))
    ref = reference_forward(x, W, bias, a, b, c, d)
    assert out.shape == (N, m)
    assert jnp.allclose(out, ref, atol=1e-5, rtol=1e-5), float(
        jnp.max(jnp.abs(out - ref)))

    # --- 2) larger aligned shape: no x padding, no output slice -------------
    N2, m2 = 48, 384
    kx2, kp2, kx3 = jax.random.split(krest, 3)
    x2 = jax.random.normal(kx2, (N2, m2), jnp.float32)
    W2, bias2, a2, b2, c2, d2 = init_raw_params(kp2, m2)

    layer2 = prepare_one_layer(W2, bias2, a2, b2, c2, d2)    # tn=tk=384, 1 k-step
    out2 = jax.block_until_ready(one_layer_forward(x2, layer2))
    ref2 = reference_forward(x2, W2, bias2, a2, b2, c2, d2)
    assert out2.shape == (N2, m2)
    assert jnp.allclose(out2, ref2, atol=1e-4, rtol=1e-4), float(
        jnp.max(jnp.abs(out2 - ref2)))

    # --- 3) force the tiled multi-k path (grid (3, 3, 3)) --------------------
    layer3 = prepare_one_layer(W2, bias2, a2, b2, c2, d2, tn=128, tk=128)
    out3 = jax.block_until_ready(one_layer_forward(x2, layer3, tm=16))
    assert out3.shape == (N2, m2)
    assert jnp.allclose(out3, ref2, atol=1e-4, rtol=1e-4), float(
        jnp.max(jnp.abs(out3 - ref2)))

    # --- 4) bf16-weight path (v6e/v7x MXU rate / halved weight HBM bytes) ---
    layer_bf16 = prepare_one_layer(W2, bias2, a2, b2, c2, d2,
                                   weight_dtype=jnp.bfloat16)
    out_bf16 = jax.block_until_ready(one_layer_forward(x2, layer_bf16))
    assert out_bf16.shape == (N2, m2)
    # bf16 operand rounding -> looser tolerance (accumulation is still f32).
    assert jnp.max(jnp.abs(out_bf16 - ref2)) < 5e-2

    print("KERNEL_OK")
</pallas_src>

<mosaic_0001>
module attributes {stable_mosaic.version = 11 : i64} {
  func.func @one_layer_kernel_single_k(%arg0: i32, %arg1: i32, %arg2: memref<8x128xf32, #tpu.memory_space<vmem>>, %arg3: memref<128x128xf32, #tpu.memory_space<vmem>>, %arg4: memref<8x128xf32, #tpu.memory_space<vmem>>, %arg5: memref<8x128xf32, #tpu.memory_space<vmem>>) attributes {dimension_semantics = [#tpu.dimension_semantics<parallel>, #tpu.dimension_semantics<parallel>], iteration_bounds = array<i64: 1, 1>, scalar_prefetch = 0 : i64, scratch_operands = 0 : i64, tpu.core_type = #tpu.core_type<tc>, window_params = [{transform_indices = @transform_0, window_bounds = array<i64: 8, 128>}, {transform_indices = @transform_1, window_bounds = array<i64: 128, 128>}, {transform_indices = @transform_2, window_bounds = array<i64: 8, 128>}, {transform_indices = @transform_3, window_bounds = array<i64: 8, 128>}]} {
    %c0 = arith.constant 0 : index
    %c0_0 = arith.constant 0 : index
    %0 = vector.load %arg2[%c0, %c0_0] : memref<8x128xf32, #tpu.memory_space<vmem>>, vector<8x128xf32>
    %c0_1 = arith.constant 0 : index
    %c0_2 = arith.constant 0 : index
    %1 = vector.load %arg3[%c0_1, %c0_2] : memref<128x128xf32, #tpu.memory_space<vmem>>, vector<128x128xf32>
    %cst = arith.constant dense<0.000000e+00> : vector<8x128xf32>
    %2 = tpu.matmul %0, %1, %cst {dimension_numbers = #tpu.dot_dimension_numbers<[1], [0], [0], [1], [0, 0, 1, 1], [], []>} : vector<8x128xf32>, vector<128x128xf32>, vector<8x128xf32> -> vector<8x128xf32>
    %c0_3 = arith.constant 0 : index
    %c0_4 = arith.constant 0 : index
    %3 = vector.load %arg4[%c0_3, %c0_4] : memref<8x128xf32, #tpu.memory_space<vmem>>, vector<8x128xf32>
    %4 = vector.extract_strided_slice %3 {offsets = [0, 0], sizes = [1, 128], strides = [1, 1]} : vector<8x128xf32> to vector<1x128xf32>
    %5 = vector.extract_strided_slice %3 {offsets = [1, 0], sizes = [1, 128], strides = [1, 1]} : vector<8x128xf32> to vector<1x128xf32>
    %6 = vector.extract_strided_slice %3 {offsets = [2, 0], sizes = [1, 128], strides = [1, 1]} : vector<8x128xf32> to vector<1x128xf32>
    %7 = vector.extract_strided_slice %3 {offsets = [3, 0], sizes = [1, 128], strides = [1, 1]} : vector<8x128xf32> to vector<1x128xf32>
    %8 = vector.extract_strided_slice %3 {offsets = [4, 0], sizes = [1, 128], strides = [1, 1]} : vector<8x128xf32> to vector<1x128xf32>
    %9 = vector.broadcast %4 : vector<1x128xf32> to vector<8x128xf32>
    %10 = arith.addf %2, %9 : vector<8x128xf32>
    %11 = vector.broadcast %5 : vector<1x128xf32> to vector<8x128xf32>
    %12 = arith.mulf %10, %11 : vector<8x128xf32>
    %13 = arith.mulf %10, %10 : vector<8x128xf32>
    %14 = vector.broadcast %6 : vector<1x128xf32> to vector<8x128xf32>
    %15 = arith.mulf %14, %13 : vector<8x128xf32>
    %16 = arith.addf %12, %15 : vector<8x128xf32>
    %17 = vector.broadcast %8 : vector<1x128xf32> to vector<8x128xf32>
    %18 = arith.mulf %17, %10 : vector<8x128xf32>
    %19 = math.sin %18 : vector<8x128xf32>
    %20 = vector.broadcast %7 : vector<1x128xf32> to vector<8x128xf32>
    %21 = arith.mulf %20, %19 : vector<8x128xf32>
    %22 = arith.addf %16, %21 : vector<8x128xf32>
    %c0_5 = arith.constant 0 : index
    %c0_6 = arith.constant 0 : index
    %23 = vector.load %arg5[%c0_5, %c0_6] : memref<8x128xf32, #tpu.memory_space<vmem>>, vector<8x128xf32>
    tpu.vector_store %arg5[%c0_5, %c0_6], %22 {strides = array<i32>} : memref<8x128xf32, #tpu.memory_space<vmem>>, vector<8x128xf32>,
    return
  }
  func.func @transform_0(%arg0: i32, %arg1: i32) -> (i32, i32) {
    %c0_i32 = arith.constant 0 : i32
    %c0_i32_0 = arith.constant 0 : i32
    return %arg0, %c0_i32 : i32, i32
  }
  func.func @transform_1(%arg0: i32, %arg1: i32) -> (i32, i32) {
    %c0_i32 = arith.constant 0 : i32
    %c0_i32_0 = arith.constant 0 : i32
    return %c0_i32, %arg1 : i32, i32
  }
  func.func @transform_2(%arg0: i32, %arg1: i32) -> (i32, i32) {
    %c0_i32 = arith.constant 0 : i32
    %c0_i32_0 = arith.constant 0 : i32
    return %c0_i32, %arg1 : i32, i32
  }
  func.func @transform_3(%arg0: i32, %arg1: i32) -> (i32, i32) {
    %c0_i32 = arith.constant 0 : i32
    return %arg0, %arg1 : i32, i32
  }
}

</mosaic_0001>

<llo_original>
// kernel: tpu_custom_call.1
$region0: #{tpu_custom_call.1}
  #allocation0 [shape = 'u32[]', space=smem, size = 0x4, offset = 0x4, fixed_abs, tag = 'smem constant byte address 0x4 - core index']
  #allocation1 [shape = 'u32[72,128]{1,0:T(1,128)}', space=vmem, size = 0x9000, scoped, tag = 'internal scratch']
  %s0 = inlined_call_operand.hbm [shape: f32[8,128], index: 0, kind: input, shape index: {}]
  %s1 = inlined_call_operand.hbm [shape: f32[128,128], index: 1, kind: input, shape index: {}]
  %s2 = inlined_call_operand.hbm [shape: f32[8,128], index: 2, kind: input, shape index: {}]
  %s3 = inlined_call_operand.hbm [shape: f32[8,128], index: 3, kind: output, shape index: {}]
  %s4 = sld [smem:[#allocation0]]
  $region34: #{tpu_custom_call.1} parent=0
    _
  %s6 = ssub.s32 1, %s4
  %s7 = scalar_select 0, %s6, %s4
  $region1: #{tpu_custom_call.1} parent=0
    #allocation2 [shape = 'u8[4096]{0}', space=vmem, size = 0x1000, scoped, tag = 'input window, operand 0, single buffered']
    #allocation3 [shape = 's32[1]{0}', space=sflag, size = 0x4, scoped, tag = 'scoped memory for tpu_custom_call.1']
    #allocation4 [shape = 's32[1]{0}', space=sflag, size = 0x4, scoped, tag = 'scoped memory for tpu_custom_call.1']
    #allocation5 [shape = 'u8[65536]{0}', space=vmem, size = 0x10000, scoped, tag = 'input window, operand 1, single buffered']
    #allocation6 [shape = 's32[1]{0}', space=sflag, size = 0x4, scoped, tag = 'scoped memory for tpu_custom_call.1']
    #allocation7 [shape = 'u8[4096]{0}', space=vmem, size = 0x1000, scoped, tag = 'input window, operand 2, single buffered']
    #allocation8 [shape = 'u8[4096]{0}', space=vmem, size = 0x1000, scoped, tag = 'output window, operand 0, single buffered']
    %8 = vsyncpa [#allocation3], 0
    %9 = vsyncpa [#allocation6], 0
    %10 = vsyncpa [#allocation4], 0
    // Predicated region
    $region2: #{tpu_custom_call.1} parent=1 // pred_check
      _
    $region3: #{tpu_custom_call.1} parent=1 // pred_check_branch
      %12 = sbr.rel (0) target = $region5
    $region4: #{tpu_custom_call.1} parent=1 // pred_region
      %14 = vsyncadd [#allocation3], 0
      %s16 = sshll.u32 %s0, 4
      %s17 = int_to_ptr.hbm [resolvable:$true] %s16
      %s18 = sshll.u32 [#allocation2], 4
      %s19 = int_to_ptr.vmem [resolvable:$true] %s18
      %21 = dma.hbm_to_vmem [thread:$0]  %s17, 128, %s19, [#allocation3]
    $region5: #{tpu_custom_call.1} parent=1 // pred_fallthru
      _
    // Predicated region
    $region6: #{tpu_custom_call.1} parent=1 // pred_check
      _
    $region7: #{tpu_custom_call.1} parent=1 // pred_check_branch
      %23 = sbr.rel (0) target = $region9
    $region8: #{tpu_custom_call.1} parent=1 // pred_region
      %25 = vsyncadd [#allocation6], 0
      %s26 = sshll.u32 %s1, 4
      %s27 = int_to_ptr.hbm [resolvable:$true] %s26
      %s28 = sshll.u32 [#allocation5], 4
      %s29 = int_to_ptr.vmem [resolvable:$true] %s28
      %34 = dma.hbm_to_vmem [thread:$0]  %s27, 2048, %s29, [#allocation6], 128, 128, 8
    $region9: #{tpu_custom_call.1} parent=1 // pred_fallthru
      _
    // Predicated region
    $region10: #{tpu_custom_call.1} parent=1 // pred_check
      _
    $region11: #{tpu_custom_call.1} parent=1 // pred_check_branch
      %36 = sbr.rel (0) target = $region13
    $region12: #{tpu_custom_call.1} parent=1 // pred_region
      %38 = vsyncadd [#allocation6], 0
      %s40 = sshll.u32 %s2, 4
      %s41 = int_to_ptr.hbm [resolvable:$true] %s40
      %s42 = sshll.u32 [#allocation7], 4
      %s43 = int_to_ptr.vmem [resolvable:$true] %s42
      %45 = dma.hbm_to_vmem [thread:$0]  %s41, 128, %s43, [#allocation6]
    $region13: #{tpu_custom_call.1} parent=1 // pred_fallthru
      _
    // Predicated region
    $region14: #{tpu_custom_call.1} parent=1 // pred_check
      _
    $region15: #{tpu_custom_call.1} parent=1 // pred_check_branch
      %47 = sbr.rel (0) target = $region17
    $region16: #{tpu_custom_call.1} parent=1 // pred_region
      %49 = dma.done [#allocation3], 128
    $region17: #{tpu_custom_call.1} parent=1 // pred_fallthru
      _
    // Predicated region
    $region18: #{tpu_custom_call.1} parent=1 // pred_check
      _
    $region19: #{tpu_custom_call.1} parent=1 // pred_check_branch
      %51 = sbr.rel (0) target = $region21
    $region20: #{tpu_custom_call.1} parent=1 // pred_region
      %53 = dma.done [#allocation6], 2048
    $region21: #{tpu_custom_call.1} parent=1 // pred_fallthru
      _
    // Predicated region
    $region22: #{tpu_custom_call.1} parent=1 // pred_check
      _
    $region23: #{tpu_custom_call.1} parent=1 // pred_check_branch
      %55 = sbr.rel (0) target = $region25
    $region24: #{tpu_custom_call.1} parent=1 // pred_region
      %57 = dma.done [#allocation6], 128
    $region25: #{tpu_custom_call.1} parent=1 // pred_fallthru
      _
    %v58 = vld [vmem:[#allocation2] sm:$0xff]
    %v59 = vld [vmem:[#allocation5] sm:$0xff]
    %v60 = vld [vmem:[#allocation5 + $0x8] sm:$0xff]
    %v61 = vld [vmem:[#allocation5 + $0x10] sm:$0xff]
    %v62 = vld [vmem:[#allocation5 + $0x18] sm:$0xff]
    %v63 = vld [vmem:[#allocation5 + $0x20] sm:$0xff]
    %v64 = vld [vmem:[#allocation5 + $0x28] sm:$0xff]
    %v65 = vld [vmem:[#allocation5 + $0x30] sm:$0xff]
    %v66 = vld [vmem:[#allocation5 + $0x38] sm:$0xff]
    %v67 = vld [vmem:[#allocation5 + $0x40] sm:$0xff]
    %v68 = vld [vmem:[#allocation5 + $0x48] sm:$0xff]
    %v69 = vld [vmem:[#allocation5 + $0x50] sm:$0xff]
    %v70 = vld [vmem:[#allocation5 + $0x58] sm:$0xff]
    %v71 = vld [vmem:[#allocation5 + $0x60] sm:$0xff]
    %v72 = vld [vmem:[#allocation5 + $0x68] sm:$0xff]
    %v73 = vld [vmem:[#allocation5 + $0x70] sm:$0xff]
    %v74 = vld [vmem:[#allocation5 + $0x78] sm:$0xff]
    %v75 = vld [vmem:[#allocation7] sm:$0xff]
    %v76 = vperm.slane %v75, 0
    %77 = vmatpush.msra.mxu0 %v74
    %78 = vmatpush.msra.mxu0 %v73
    %79 = vmatpush.msra.mxu0 %v72
    %80 = vmatpush.msra.mxu0 %v71
    %81 = vmatpush.msra.mxu0 %v70
    %82 = vmatpush.msra.mxu0 %v69
    %83 = vmatpush.msra.mxu0 %v68
    %84 = vmatpush.msra.mxu0 %v67
    %85 = vmatpush.msra.mxu0 %v66
    %86 = vmatpush.msra.mxu0 %v65
    %87 = vmatpush.msra.mxu0 %v64
    %88 = vmatpush.msra.mxu0 %v63
    %89 = vmatpush.msra.mxu0 %v62
    %90 = vmatpush.msra.mxu0 %v61
    %91 = vmatpush.msra.mxu0 %v60
    %92 = vmatpush.msra.mxu0 %v59
    %93 = vmatmul.f32.gmra.mxu0 %v58
    %v94 = vpop.f32.mrf.mxu0
    %v95 = vadd.f32 %v76, %v94
    %96 = vdwg.mxu0
    %v97 = vperm.slane %v75, 1
    %v98 = vmul.f32 %v95, %v97
    %v99 = vmul.f32 %v95, %v95
    %v100 = vperm.slane %v75, 2
    %v101 = vmul.f32 %v100, %v99
    %v102 = vadd.f32 %v98, %v101
    %v103 = vperm.slane %v75, 4
    %v104 = vmul.f32 %v103, %v95
    %v105 = vand.u32 2147483647, %v104
    %vm106 = vcmp.le.f32.partialorder %v105, 0.7853982
    %vm107 = vcmp.lt.s32.totalorder %v104, 0
    %v108 = vand.u32 %v104, 2139095040
    %v109 = vshrl.u32 %v108, 23
    %v110 = vsub.s32 %v109, 127
    %v111 = vand.u32 2147483647, %v104
    %v112 = vand.u32 %v111, 8388607
    %v113 = vor.u32 %v112, 8388608
    %v114 = vsub.s32 0, %v113
    %v115 = vadd.s32 %v110, 1
    %vm116 = vcmp.gt.s32.totalorder %v115, 0
    %v117 = vsel %vm116, %v115, 0
    %v118 = vshrl.u32 %v117, 5
    %v119 = vand.u32 %v117, 31
    %v120 = vsub.s32 32, %v119
    %v121 = vshrl.u32 683565275, %v120
    %v122 = vshll.u32 683565275, %v119
    %v123 = vshrl.u32 2475754826, %v120
    %v124 = vor.u32 %v122, %v123
    %v125 = vshll.u32 2475754826, %v119
    %v126 = vshrl.u32 2131351028, %v120
    %v127 = vor.u32 %v125, %v126
    %v128 = vshll.u32 2131351028, %v119
    %v129 = vshrl.u32 2102212464, %v120
    %v130 = vor.u32 %v128, %v129
    %v131 = vshll.u32 2102212464, %v119
    %v132 = vshrl.u32 920167782, %v120
    %v133 = vor.u32 %v131, %v132
    %v134 = vshll.u32 920167782, %v119
    %v135 = vshrl.u32 1326507024, %v120
    %v136 = vor.u32 %v134, %v135
    %vm137 = vcmp.lt.s32.totalorder %v118, 1
    %vm138 = vcmp.lt.s32.totalorder %v118, 2
    %vm139 = vcmp.lt.s32.totalorder %v118, 3
    %vm140 = vcmp.lt.s32.totalorder %v118, 4
    %v141 = vsel %vm137, %v121, %v124
    %v142 = vsel %vm140, %v130, 2102212464
    %v143 = vsel %vm139, %v127, %v142
    %v144 = vsel %vm138, %v141, %v143
    %v145 = vsel %vm137, %v124, %v127
    %v146 = vsel %vm140, %v133, 920167782
    %v147 = vsel %vm139, %v130, %v146
    %v148 = vsel %vm138, %v145, %v147
    %v149 = vsel %vm137, %v127, %v130
    %v150 = vsel %vm140, %v136, 1326507024
    %v151 = vsel %vm139, %v133, %v150
    %v152 = vsel %vm138, %v149, %v151
    %v153 = vshll.u32 %v113, 8
    %v154 = vand.u32 %v153, 65535
    %v155 = vshrl.u32 %v153, 16
    %v156 = vand.u32 %v152, 65535
    %v157 = vshrl.u32 %v152, 16
    %v158 = vmul.u32 %v154, %v156
    %v159 = vmul.u32 %v154, %v157
    %v160 = vmul.u32 %v155, %v156
    %v161 = vmul.u32 %v155, %v157
    %v162 = vshll.u32 %v159, 16
    %v163 = vshrl.u32 %v159, 16
    %v164 = vshll.u32 %v160, 16
    %v165 = vshrl.u32 %v160, 16
    %vm166 = vc.u32 %v158, %v162
    %v167 = vsel %vm166, 1, 0
    %v168 = vadd.s32 %v158, %v162
    %v169 = vadd.s32 %v161, %v167
    %vm170 = vc.u32 %v168, %v164
    %v171 = vsel %vm170, 1, 0
    %v172 = vadd.s32 %v168, %v164
    %v173 = vadd.s32 %v169, %v171
    %v174 = vadd.s32 %v173, %v163
    %v175 = vadd.s32 %v174, %v165
    %v176 = vand.u32 %v153, 65535
    %v177 = vshrl.u32 %v153, 16
    %v178 = vand.u32 %v148, 65535
    %v179 = vshrl.u32 %v148, 16
    %v180 = vmul.u32 %v176, %v178
    %v181 = vmul.u32 %v176, %v179
    %v182 = vmul.u32 %v177, %v178
    %v183 = vmul.u32 %v177, %v179
    %v184 = vshll.u32 %v181, 16
    %v185 = vshrl.u32 %v181, 16
    %v186 = vshll.u32 %v182, 16
    %v187 = vshrl.u32 %v182, 16
    %vm188 = vc.u32 %v180, %v184
    %v189 = vsel %vm188, 1, 0
    %v190 = vadd.s32 %v180, %v184
    %v191 = vadd.s32 %v183, %v189
    %vm192 = vc.u32 %v190, %v186
    %v193 = vsel %vm192, 1, 0
    %v194 = vadd.s32 %v190, %v186
    %v195 = vadd.s32 %v191, %v193
    %v196 = vadd.s32 %v195, %v185
    %v197 = vadd.s32 %v196, %v187
    %v198 = vmul.u32 %v153, %v144
    %v199 = vadd.s32 %v175, %v194
    %vm200 = vc.u32 %v175, %v194
    %v201 = vadd.s32 %v197, 1
    %v202 = vsel %vm200, %v201, %v197
    %v203 = vadd.s32 %v198, %v202
    %v204 = vadd.s32 %v203, 536870912
    %v205 = vshrl.u32 %v204, 30
    %v206 = vshll.u32 %v205, 30
    %v207 = vsub.s32 %v203, %v206
    %vm208 = vcmp.lt.s32.totalorder %v207, 0
    %v209 = vsub.s32 0, %v207
    %v210 = vsel %vm208, %v209, %v207
    %v211 = vclz %v210
    %v212 = vsub.s32 %v211, 2
    %vm213 = vcmp.gt.s32.totalorder 0, %v212
    %v214 = vsel %vm213, 0, %v212
    %v215 = vsub.s32 32, %v214
    %v216 = vshll.u32 %v207, %v214
    %v217 = vshrl.u32 %v199, %v215
    %v218 = vor.u32 %v216, %v217
    %v219 = vsub.s32 4294967266, %v214
    %v220 = vadd.s32 %v219, 127
    %v221 = vshll.u32 %v220, 23
    %v222 = vor.u32 4788187, %v221
    %v223 = vand.u32 2147483647, %v222
    %v225 = vcvt.s32.f32 %v218
    %v226 = vmul.f32 %v225, %v223
    %v227 = vxor.u32 %v226, 2147483648
    %v228 = vsel %vm107, %v227, %v226
    %v229 = vsub.s32 4, %v205
    %v230 = vsel %vm107, %v229, %v205
    %v231 = vsel %vm106, %v104, %v228
    %v232 = vsel %vm106, 0, %v230
    %v233 = vmul.f32 %v231, %v231
    %v234 = vmul.f32 %v233, -0.001358992
    %v235 = vadd.f32 %v234, 0.041655596
    %v236 = vmul.f32 %v233, %v235
    %v237 = vadd.f32 %v236, -0.4999988
    %v238 = vmul.f32 %v233, %v237
    %v239 = vadd.f32 1.0, %v238
    %v240 = vmul.f32 %v231, %v231
    %v241 = vmul.f32 %v240, -0.00019511016
    %v242 = vadd.f32 %v241, 0.008332121
    %v243 = vmul.f32 %v240, %v242
    %v244 = vadd.f32 %v243, -0.16666654
    %v245 = vmul.f32 %v240, %v244
    %v246 = vadd.f32 %v245, 1.0
    %v247 = vmul.f32 %v246, %v231
    %vm248 = vweird.f32 %v104
    %v249 = vadd.s32 %v232, 3
    %v250 = vand.u32 %v249, 3
    %vm251 = vcmp.lt.s32.totalorder %v250, 2
    %vm252 = vcmp.eq.s32.totalorder %v250, 0
    %v253 = vxor.u32 %v247, 2147483648
    %v254 = vsel %vm252, %v239, %v253
    %vm255 = vcmp.eq.s32.totalorder %v250, 2
    %v256 = vxor.u32 %v239, 2147483648
    %v257 = vsel %vm255, %v256, %v247
    %v258 = vsel %vm251, %v254, %v257
    %v259 = vsel %vm248, nan, %v258
    %v260 = vperm.slane %v75, 3
    %v261 = vmul.f32 %v260, %v259
    %v262 = vadd.f32 %v102, %v261
    %263 = vst [vmem:[#allocation8] sm:$0xff] %v262
    // Predicated region
    $region26: #{tpu_custom_call.1} parent=1 // pred_check
      _
    $region27: #{tpu_custom_call.1} parent=1 // pred_check_branch
      %265 = sbr.rel (0) target = $region29
    $region28: #{tpu_custom_call.1} parent=1 // pred_region
      %267 = vsyncadd [#allocation4], 0
      %s269 = sshll.u32 [#allocation8], 4
      %s270 = int_to_ptr.vmem [resolvable:$true] %s269
      %s271 = sshll.u32 %s3, 4
      %s272 = int_to_ptr.hbm [resolvable:$true] %s271
      %274 = dma.vmem_to_hbm [thread:$0]  %s270, 128, %s272, [#allocation4]
    $region29: #{tpu_custom_call.1} parent=1 // pred_fallthru
      _
    // Predicated region
    $region30: #{tpu_custom_call.1} parent=1 // pred_check
      _
    $region31: #{tpu_custom_call.1} parent=1 // pred_check_branch
      %276 = sbr.rel (0) target = $region33
    $region32: #{tpu_custom_call.1} parent=1 // pred_region
      %278 = dma.done [#allocation4], 128
    $region33: #{tpu_custom_call.1} parent=1 // pred_fallthru
      _
    %279 = vsyncpa [#allocation3], 1
    %280 = vsyncpa [#allocation6], 1
    %281 = vsyncpa [#allocation4], 1

</llo_original>
